<compile_context>
chip_gen: v6e
topology: v6e:2x2x1
jax: 0.10.0
libtpu: 0.0.40
codegen_flags: <defaults>
</compile_context>

<pallas_src>
import jax
import jax.numpy as jnp
from jax.experimental import pallas as pl
from jax.experimental.pallas import tpu as pltpu


def _multiple_update_kernel(gamma_ref, i_ref, mul_ref, minus_ref, out_ref):
    gamma = gamma_ref[0]                         # f32 scalar from SMEM
    i = i_ref[...].astype(jnp.float32)
    mul = mul_ref[...].astype(jnp.float32)
    minus = minus_ref[...].astype(jnp.float32)
    out_ref[...] = (mul + gamma * (i - minus)).astype(out_ref.dtype)


def multiple_update(I, mul_output, minus_output, gamma,
                    *, lanes=512, max_block_rows=256):
    assert I.shape == mul_output.shape == minus_output.shape
    orig_shape = I.shape
    orig_dtype = I.dtype

    total = 1
    for d in orig_shape:
        total *= d

    # Sublane granularity depends on dtype width (f32: 8, bf16: 16, 8-bit: 32).
    itemsize = jnp.dtype(orig_dtype).itemsize
    sublane = {4: 8, 2: 16, 1: 32}.get(itemsize, 8)

    # Lane-dense slab: (rows, lanes), lanes is a multiple of 128.
    rows = pl.cdiv(total, lanes)
    # Block rows: big enough to amortize per-step overhead (~0.35 us),
    # small enough to keep 4 arrays x 2 buffers well under scoped VMEM.
    block_rows = min(max_block_rows, ((rows + sublane - 1) // sublane) * sublane)
    padded_rows = ((rows + block_rows - 1) // block_rows) * block_rows
    padded_total = padded_rows * lanes

    def to_slab(x):
        flat = x.reshape(-1)
        if padded_total != total:
            flat = jnp.pad(flat, (0, padded_total - total))
        return flat.reshape(padded_rows, lanes)

    i2 = to_slab(I)
    m2 = to_slab(mul_output)
    s2 = to_slab(minus_output)

    # Keep gamma in float32 regardless of input dtype (parity with a PyTorch
    # float parameter); it is applied in f32 inside the kernel.
    gamma_arr = jnp.asarray([gamma], dtype=jnp.float32)

    grid = (padded_rows // block_rows,)
    tile_spec = pl.BlockSpec((block_rows, lanes), lambda i: (i, 0))

    out2 = pl.pallas_call(
        _multiple_update_kernel,
        out_shape=jax.ShapeDtypeStruct((padded_rows, lanes), orig_dtype),
        grid_spec=pltpu.PrefetchScalarGridSpec(
            num_scalar_prefetch=0,
            grid=grid,
            in_specs=[
                pl.BlockSpec(memory_space=pltpu.SMEM),  # gamma scalar
                tile_spec,                              # I
                tile_spec,                              # mul_output
                tile_spec,                              # minus_output
            ],
            out_specs=tile_spec,
        ),
        compiler_params=pltpu.CompilerParams(
            dimension_semantics=("parallel",),          # shards across TCs on v7x
        ),
    )(gamma_arr, i2, m2, s2)

    return out2.reshape(-1)[:total].reshape(orig_shape)


if __name__ == "__main__":
    key = jax.random.PRNGKey(0)
    k1, k2, k3 = jax.random.split(key, 3)

    # NCHW inputs, small shapes
    shape = (2, 4, 16, 16)
    I = jax.random.normal(k1, shape, dtype=jnp.float32)
    mul_output = jax.random.normal(k2, shape, dtype=jnp.float32)
    minus_output = jax.random.normal(k3, shape, dtype=jnp.float32)
    gamma = 0.5  # deterministic "parameter" from __init__(gamma)

    out = multiple_update(I, mul_output, minus_output, gamma)
    out = jax.block_until_ready(out)

    # Reference check (plain JAX)
    ref = mul_output + gamma * (I - minus_output)
    assert jnp.allclose(out, ref, atol=1e-6), "mismatch vs reference"

    print("KERNEL_OK")
</pallas_src>

<mosaic_0001>
module attributes {stable_mosaic.version = 11 : i64} {
  func.func @_multiple_update_kernel(%arg0: i32, %arg1: memref<1xf32, #tpu.memory_space<smem>>, %arg2: memref<8x512xf32, #tpu.memory_space<vmem>>, %arg3: memref<8x512xf32, #tpu.memory_space<vmem>>, %arg4: memref<8x512xf32, #tpu.memory_space<vmem>>, %arg5: memref<8x512xf32, #tpu.memory_space<vmem>>) attributes {dimension_semantics = [#tpu.dimension_semantics<parallel>], iteration_bounds = array<i64: 1>, scalar_prefetch = 0 : i64, scratch_operands = 0 : i64, tpu.core_type = #tpu.core_type<tc>, window_params = [{transform_indices = @transform_0, window_bounds = array<i64: 1>}, {transform_indices = @transform_1, window_bounds = array<i64: 8, 512>}, {transform_indices = @transform_2, window_bounds = array<i64: 8, 512>}, {transform_indices = @transform_3, window_bounds = array<i64: 8, 512>}, {transform_indices = @transform_4, window_bounds = array<i64: 8, 512>}]} {
    %c0 = arith.constant 0 : index
    %0 = memref.load %arg1[%c0] : memref<1xf32, #tpu.memory_space<smem>>
    %c0_0 = arith.constant 0 : index
    %c0_1 = arith.constant 0 : index
    %1 = vector.load %arg2[%c0_0, %c0_1] : memref<8x512xf32, #tpu.memory_space<vmem>>, vector<8x512xf32>
    %c0_2 = arith.constant 0 : index
    %c0_3 = arith.constant 0 : index
    %2 = vector.load %arg3[%c0_2, %c0_3] : memref<8x512xf32, #tpu.memory_space<vmem>>, vector<8x512xf32>
    %c0_4 = arith.constant 0 : index
    %c0_5 = arith.constant 0 : index
    %3 = vector.load %arg4[%c0_4, %c0_5] : memref<8x512xf32, #tpu.memory_space<vmem>>, vector<8x512xf32>
    %4 = arith.subf %1, %3 : vector<8x512xf32>
    %5 = vector.broadcast %0 : f32 to vector<8x512xf32>
    %6 = arith.mulf %5, %4 : vector<8x512xf32>
    %7 = arith.addf %2, %6 : vector<8x512xf32>
    %c0_6 = arith.constant 0 : index
    %c0_7 = arith.constant 0 : index
    %8 = vector.load %arg5[%c0_6, %c0_7] : memref<8x512xf32, #tpu.memory_space<vmem>>, vector<8x512xf32>
    tpu.vector_store %arg5[%c0_6, %c0_7], %7 {strides = array<i32>} : memref<8x512xf32, #tpu.memory_space<vmem>>, vector<8x512xf32>,
    return
  }
  func.func @transform_0(%arg0: i32) -> i32 {
    %c0_i32 = arith.constant 0 : i32
    %c0_i32_0 = arith.constant 0 : i32
    return %c0_i32 : i32
  }
  func.func @transform_1(%arg0: i32) -> (i32, i32) {
    %c0_i32 = arith.constant 0 : i32
    %c0_i32_0 = arith.constant 0 : i32
    return %arg0, %c0_i32 : i32, i32
  }
  func.func @transform_2(%arg0: i32) -> (i32, i32) {
    %c0_i32 = arith.constant 0 : i32
    %c0_i32_0 = arith.constant 0 : i32
    return %arg0, %c0_i32 : i32, i32
  }
  func.func @transform_3(%arg0: i32) -> (i32, i32) {
    %c0_i32 = arith.constant 0 : i32
    %c0_i32_0 = arith.constant 0 : i32
    return %arg0, %c0_i32 : i32, i32
  }
  func.func @transform_4(%arg0: i32) -> (i32, i32) {
    %c0_i32 = arith.constant 0 : i32
    %c0_i32_0 = arith.constant 0 : i32
    return %arg0, %c0_i32 : i32, i32
  }
}

</mosaic_0001>

<llo_original>
// kernel: tpu_custom_call.1
$region0: #{tpu_custom_call.1}
  #allocation0 [shape = 'u32[]', space=smem, size = 0x4, offset = 0x4, fixed_abs, tag = 'smem constant byte address 0x4 - core index']
  #allocation1 [shape = 'u32[144,128]{1,0:T(1,128)}', space=vmem, size = 0x12000, scoped, tag = 'internal scratch']
  #allocation2 [shape = 'f32[1]{0:T(128)S(6)}', space=smem, size = 0x200, scoped, tag = 'scoped memory for tpu_custom_call.1']
  %s0 = inlined_call_operand.<no memory space> [shape: f32[1], index: 0, kind: input, shape index: {}]
  %s1 = inlined_call_operand.hbm [shape: f32[8,512], index: 1, kind: input, shape index: {}]
  %s2 = inlined_call_operand.hbm [shape: f32[8,512], index: 2, kind: input, shape index: {}]
  %s3 = inlined_call_operand.hbm [shape: f32[8,512], index: 3, kind: input, shape index: {}]
  %s4 = inlined_call_operand.hbm [shape: f32[8,512], index: 4, kind: output, shape index: {}]
  %s5 = sld [smem:[#allocation0]]
  $region38: #{tpu_custom_call.1} parent=0
    _
  %s7 = ssub.s32 1, %s5
  %s8 = scalar_select 0, %s7, %s5
  %9 = sst [smem:[#allocation2]] %s0
  $region1: #{tpu_custom_call.1} parent=0
    #allocation3 [shape = 'u8[16384]{0}', space=vmem, size = 0x4000, scoped, tag = 'input window, operand 1, single buffered']
    #allocation4 [shape = 's32[1]{0}', space=sflag, size = 0x4, scoped, tag = 'scoped memory for tpu_custom_call.1']
    #allocation5 [shape = 's32[1]{0}', space=sflag, size = 0x4, scoped, tag = 'scoped memory for tpu_custom_call.1']
    #allocation6 [shape = 'u8[16384]{0}', space=vmem, size = 0x4000, scoped, tag = 'input window, operand 2, single buffered']
    #allocation7 [shape = 's32[1]{0}', space=sflag, size = 0x4, scoped, tag = 'scoped memory for tpu_custom_call.1']
    #allocation8 [shape = 'u8[16384]{0}', space=vmem, size = 0x4000, scoped, tag = 'input window, operand 3, single buffered']
    #allocation9 [shape = 'u8[16384]{0}', space=vmem, size = 0x4000, scoped, tag = 'output window, operand 0, single buffered']
    %10 = vsyncpa [#allocation4], 0
    %11 = vsyncpa [#allocation7], 0
    %12 = vsyncpa [#allocation5], 0
    // Predicated region
    $region2: #{tpu_custom_call.1} parent=1 // pred_check
      _
    $region3: #{tpu_custom_call.1} parent=1 // pred_check_branch
      %14 = sbr.rel (0) target = $region5
    $region4: #{tpu_custom_call.1} parent=1 // pred_region
      _
    $region5: #{tpu_custom_call.1} parent=1 // pred_fallthru
      _
    // Predicated region
    $region6: #{tpu_custom_call.1} parent=1 // pred_check
      _
    $region7: #{tpu_custom_call.1} parent=1 // pred_check_branch
      %16 = sbr.rel (0) target = $region9
    $region8: #{tpu_custom_call.1} parent=1 // pred_region
      %s18 = ssub.s32 512, 512
      %19 = vsyncadd [#allocation4], %s18
      %s21 = sshll.u32 [#allocation3], 4
      %s22 = int_to_ptr.vmem [resolvable:$true] %s21
      %24 = dma.hbm_to_vmem [thread:$0]  %s1, 512, %s22, [#allocation4]
    $region9: #{tpu_custom_call.1} parent=1 // pred_fallthru
      _
    // Predicated region
    $region10: #{tpu_custom_call.1} parent=1 // pred_check
      _
    $region11: #{tpu_custom_call.1} parent=1 // pred_check_branch
      %26 = sbr.rel (0) target = $region13
    $region12: #{tpu_custom_call.1} parent=1 // pred_region
      %s28 = ssub.s32 512, 512
      %29 = vsyncadd [#allocation7], %s28
      %s31 = sshll.u32 [#allocation6], 4
      %s32 = int_to_ptr.vmem [resolvable:$true] %s31
      %34 = dma.hbm_to_vmem [thread:$0]  %s2, 512, %s32, [#allocation7]
    $region13: #{tpu_custom_call.1} parent=1 // pred_fallthru
      _
    // Predicated region
    $region14: #{tpu_custom_call.1} parent=1 // pred_check
      _
    $region15: #{tpu_custom_call.1} parent=1 // pred_check_branch
      %36 = sbr.rel (0) target = $region17
    $region16: #{tpu_custom_call.1} parent=1 // pred_region
      %s38 = ssub.s32 512, 512
      %39 = vsyncadd [#allocation7], %s38
      %s41 = sshll.u32 [#allocation8], 4
      %s42 = int_to_ptr.vmem [resolvable:$true] %s41
      %44 = dma.hbm_to_vmem [thread:$0]  %s3, 512, %s42, [#allocation7]
    $region17: #{tpu_custom_call.1} parent=1 // pred_fallthru
      _
    // Predicated region
    $region18: #{tpu_custom_call.1} parent=1 // pred_check
      _
    $region19: #{tpu_custom_call.1} parent=1 // pred_check_branch
      %46 = sbr.rel (0) target = $region21
    $region20: #{tpu_custom_call.1} parent=1 // pred_region
      %47 = dma.done [#allocation4], 512
    $region21: #{tpu_custom_call.1} parent=1 // pred_fallthru
      _
    // Predicated region
    $region22: #{tpu_custom_call.1} parent=1 // pred_check
      _
    $region23: #{tpu_custom_call.1} parent=1 // pred_check_branch
      %49 = sbr.rel (0) target = $region25
    $region24: #{tpu_custom_call.1} parent=1 // pred_region
      %50 = dma.done [#allocation7], 512
    $region25: #{tpu_custom_call.1} parent=1 // pred_fallthru
      _
    // Predicated region
    $region26: #{tpu_custom_call.1} parent=1 // pred_check
      _
    $region27: #{tpu_custom_call.1} parent=1 // pred_check_branch
      %52 = sbr.rel (0) target = $region29
    $region28: #{tpu_custom_call.1} parent=1 // pred_region
      %53 = dma.done [#allocation7], 512
    $region29: #{tpu_custom_call.1} parent=1 // pred_fallthru
      _
    %s54 = sld [smem:[#allocation2]]
    %v55 = vld [vmem:[#allocation3] sm:$0xff]
    %v56 = vld [vmem:[#allocation3 + $0x8] sm:$0xff]
    %v57 = vld [vmem:[#allocation3 + $0x10] sm:$0xff]
    %v58 = vld [vmem:[#allocation3 + $0x18] sm:$0xff]
    %v59 = vld [vmem:[#allocation6] sm:$0xff]
    %v60 = vld [vmem:[#allocation6 + $0x8] sm:$0xff]
    %v61 = vld [vmem:[#allocation6 + $0x10] sm:$0xff]
    %v62 = vld [vmem:[#allocation6 + $0x18] sm:$0xff]
    %v63 = vld [vmem:[#allocation8] sm:$0xff]
    %v64 = vld [vmem:[#allocation8 + $0x8] sm:$0xff]
    %v65 = vld [vmem:[#allocation8 + $0x10] sm:$0xff]
    %v66 = vld [vmem:[#allocation8 + $0x18] sm:$0xff]
    %v67 = vsub.f32 %v55, %v63
    %v68 = vsub.f32 %v56, %v64
    %v69 = vsub.f32 %v57, %v65
    %v70 = vsub.f32 %v58, %v66
    %v71 = vstv %s54
    %v72 = vmul.f32 %v71, %v67
    %v73 = vmul.f32 %v71, %v68
    %v74 = vmul.f32 %v71, %v69
    %v75 = vmul.f32 %v71, %v70
    %v76 = vadd.f32 %v59, %v72
    %v77 = vadd.f32 %v60, %v73
    %v78 = vadd.f32 %v61, %v74
    %v79 = vadd.f32 %v62, %v75
    %80 = vst [vmem:[#allocation9] sm:$0xff] %v76
    %81 = vst [vmem:[#allocation9 + $0x8] sm:$0xff] %v77
    %82 = vst [vmem:[#allocation9 + $0x10] sm:$0xff] %v78
    %83 = vst [vmem:[#allocation9 + $0x18] sm:$0xff] %v79
    // Predicated region
    $region30: #{tpu_custom_call.1} parent=1 // pred_check
      _
    $region31: #{tpu_custom_call.1} parent=1 // pred_check_branch
      %85 = sbr.rel (0) target = $region33
    $region32: #{tpu_custom_call.1} parent=1 // pred_region
      %s87 = ssub.s32 512, 512
      %88 = vsyncadd [#allocation5], %s87
      %s90 = sshll.u32 [#allocation9], 4
      %s91 = int_to_ptr.vmem [resolvable:$true] %s90
      %93 = dma.vmem_to_hbm [thread:$0]  %s91, 512, %s4, [#allocation5]
    $region33: #{tpu_custom_call.1} parent=1 // pred_fallthru
      _
    // Predicated region
    $region34: #{tpu_custom_call.1} parent=1 // pred_check
      _
    $region35: #{tpu_custom_call.1} parent=1 // pred_check_branch
      %95 = sbr.rel (0) target = $region37
    $region36: #{tpu_custom_call.1} parent=1 // pred_region
      %96 = dma.done [#allocation5], 512
    $region37: #{tpu_custom_call.1} parent=1 // pred_fallthru
      _
    %97 = vsyncpa [#allocation4], 1
    %98 = vsyncpa [#allocation7], 1
    %99 = vsyncpa [#allocation5], 1

</llo_original>
